<compile_context>
chip_gen: v7x
topology: tpu7x:2x2x1
jax: 0.10.0
libtpu: 0.0.40
codegen_flags: <defaults>
</compile_context>

<pallas_src>
import functools

import jax
import jax.numpy as jnp
from jax.experimental import pallas as pl
from jax.experimental.pallas import tpu as pltpu


def _round_up(x, m):
    return (x + m - 1) // m * m


def _ce_g_loss_kernel(x_ref, label_ref, out_ref, ce_acc, sq_acc, *,
                      tile_n, tiles_per_split, n_valid, n_classes,
                      loss_weight, penalty_weight, mask_rows):
    """One row-tile of softmax cross-entropy + squared-activation accumulation.

    x_ref:     (TN, C)  logits tile (native dtype; cast to f32 here)
    label_ref: (TN, 1)  int32 class indices tile
    out_ref:   (1, 1)   f32 per-split partial loss (SMEM)
    ce_acc:    (TN, 1)  f32 VMEM accumulator of per-row CE terms
    sq_acc:    (TN, 1)  f32 VMEM accumulator of per-row sum(x^2)
    """
    p = pl.program_id(0)          # split (parallel) index
    k = pl.program_id(1)          # tile index within the split (arbitrary)

    @pl.when(k == 0)
    def _():
        ce_acc[...] = jnp.zeros_like(ce_acc)
        sq_acc[...] = jnp.zeros_like(sq_acc)

    x = x_ref[...].astype(jnp.float32)            # (TN, C) f32 compute
    labels = label_ref[...]                       # (TN, 1) int32
    tn, c = x.shape

    # Numerically-stable per-row log-sum-exp.
    row_max = jnp.max(x, axis=-1, keepdims=True)                       # (TN, 1)
    lse = jnp.log(jnp.sum(jnp.exp(x - row_max), axis=-1,
                          keepdims=True)) + row_max                    # (TN, 1)

    # Gather logit at the label via a one-hot lane compare.
    class_ids = jax.lax.broadcasted_iota(jnp.int32, (tn, c), 1)        # (TN, C)
    picked = jnp.sum(jnp.where(class_ids == labels, x, 0.0),
                     axis=-1, keepdims=True)                           # (TN, 1)

    ce_row = lse - picked                                              # (TN, 1)
    sq_row = jnp.sum(x * x, axis=-1, keepdims=True)                    # (TN, 1)

    if mask_rows:
        # Only emitted when the wrapper actually padded N.
        tile_idx = p * tiles_per_split + k
        row_ids = tile_idx * tile_n + jax.lax.broadcasted_iota(
            jnp.int32, (tn, 1), 0)
        valid = row_ids < n_valid                                      # (TN, 1)
        ce_row = jnp.where(valid, ce_row, 0.0)
        sq_row = jnp.where(valid, sq_row, 0.0)

    # Element-wise (VPU) accumulation — no reduce-to-scalar inside the loop.
    ce_acc[...] += ce_row
    sq_acc[...] += sq_row

    # Single full reduction + scalar write, once per split.
    @pl.when(k == pl.num_programs(1) - 1)
    def _():
        ce_sum = jnp.sum(ce_acc[...])
        sq_sum = jnp.sum(sq_acc[...])
        out_ref[0, 0] = (jnp.float32(loss_weight) * ce_sum
                         / jnp.float32(n_valid)
                         + jnp.float32(penalty_weight) * sq_sum
                         / jnp.float32(n_valid * n_classes))


def cross_entropy_g_loss(cls_score, label, *, loss_weight=1.0,
                         penalty_weight=1.0, tile_n=None, max_splits=2):
    """Pallas implementation of CrossEntropyGLoss.forward (reduction='mean')."""
    n, c = cls_score.shape
    itemsize = jnp.dtype(cls_score.dtype).itemsize
    row_align = 16                       # sublane granularity (covers bf16 too)
    c_lanes = _round_up(c, 128)          # VMEM lane padding of the class dim

    # ~2 MiB of (lane-padded, native-dtype) VMEM per logits block; with
    # double-buffering, label tiles, the f32 compute copy and the two
    # accumulators this stays well under every chip's scoped-VMEM default.
    budget_rows = max(row_align, (2 * 1024 * 1024) // (c_lanes * itemsize))
    cap_rows = min(2048, budget_rows)

    if tile_n is None:
        if n <= cap_rows:
            # Whole problem in one block: no padding copy, no masking.
            tile_n = n
        else:
            base = max(row_align, (cap_rows // row_align) * row_align)
            tile_n = base
            # Prefer a tile that divides N exactly -> avoids a full HBM
            # read+write of the logits just to pad them. Don't shrink below
            # base/8 (keeps DMA blocks large enough to stay near roofline).
            floor = max(row_align, (base // 8 // row_align) * row_align)
            for cand in range(base, floor - 1, -row_align):
                if n % cand == 0:
                    tile_n = cand
                    break
    else:
        tile_n = max(1, min(int(tile_n), n))
        if tile_n != n:
            tile_n = max(row_align, (tile_n // row_align) * row_align)

    n_pad = _round_up(n, tile_n)
    num_tiles = n_pad // tile_n

    # Split rows across (up to) two TensorCores via a leading parallel axis,
    # but never introduce padding that a single split would not already need.
    num_splits = 1
    if max_splits > 1 and num_tiles >= max_splits:
        n_pad_split = _round_up(n, tile_n * max_splits)
        if n_pad_split == n_pad or n_pad != n:
            num_splits = max_splits
            n_pad = n_pad_split
            num_tiles = n_pad // tile_n
    tiles_per_split = num_tiles // num_splits

    x = cls_score                        # keep native dtype (bf16 stays bf16)
    lab = label.astype(jnp.int32)
    mask_rows = (n_pad != n)
    if mask_rows:
        x = jnp.pad(x, ((0, n_pad - n), (0, 0)))
        lab = jnp.pad(lab, (0, n_pad - n))
    lab2d = lab.reshape(n_pad, 1)

    kernel = functools.partial(
        _ce_g_loss_kernel,
        tile_n=tile_n, tiles_per_split=tiles_per_split,
        n_valid=n, n_classes=c,
        loss_weight=float(loss_weight), penalty_weight=float(penalty_weight),
        mask_rows=mask_rows)

    out = pl.pallas_call(
        kernel,
        out_shape=jax.ShapeDtypeStruct((num_splits, 1), jnp.float32),
        grid_spec=pltpu.PrefetchScalarGridSpec(
            num_scalar_prefetch=0,
            grid=(num_splits, tiles_per_split),
            in_specs=[
                pl.BlockSpec((tile_n, c),
                             lambda p, k: (p * tiles_per_split + k, 0)),
                pl.BlockSpec((tile_n, 1),
                             lambda p, k: (p * tiles_per_split + k, 0)),
            ],
            out_specs=pl.BlockSpec((1, 1), lambda p, k: (p, 0),
                                   memory_space=pltpu.SMEM),
            scratch_shapes=[pltpu.VMEM((tile_n, 1), jnp.float32),
                            pltpu.VMEM((tile_n, 1), jnp.float32)],
        ),
        compiler_params=pltpu.CompilerParams(
            dimension_semantics=("parallel", "arbitrary")),
    )(x, lab2d)
    return jnp.sum(out)


def _reference(cls_score, label, loss_weight=1.0, penalty_weight=1.0):
    """Pure-JAX reference mirroring torch F.cross_entropy + penalty term."""
    x = cls_score.astype(jnp.float32)
    lse = jax.scipy.special.logsumexp(x, axis=-1)
    picked = jnp.take_along_axis(x, label[:, None].astype(jnp.int32),
                                 axis=-1)[:, 0]
    loss_cls = jnp.mean(lse - picked)
    penalty = jnp.mean(x * x)
    return loss_weight * loss_cls + penalty_weight * penalty


if __name__ == "__main__":
    key = jax.random.PRNGKey(0)
    k1, k2, k3, k4 = jax.random.split(key, 4)

    # Check 1: small f32 problem -> single full block, grid (1, 1), no padding.
    N, C = 128, 16
    cls_score = jax.random.normal(k1, (N, C), dtype=jnp.float32)
    label = jax.random.randint(k2, (N,), 0, C, dtype=jnp.int32)
    out = jax.block_until_ready(cross_entropy_g_loss(cls_score, label))
    ref = _reference(cls_score, label)
    assert jnp.allclose(out, ref, rtol=1e-5, atol=1e-5), (out, ref)

    # Check 2: non-divisible N with a forced small tile -> padding + masking,
    # multi-tile grid, 2-way parallel split, accumulators exercised.
    N2, C2 = 100, 21
    x2 = jax.random.normal(k3, (N2, C2), dtype=jnp.float32) * 3.0
    y2 = jax.random.randint(k4, (N2,), 0, C2, dtype=jnp.int32)
    out2 = jax.block_until_ready(
        cross_entropy_g_loss(x2, y2, loss_weight=0.5, penalty_weight=2.0,
                             tile_n=16))
    ref2 = _reference(x2, y2, loss_weight=0.5, penalty_weight=2.0)
    assert jnp.allclose(out2, ref2, rtol=1e-5, atol=1e-5), (out2, ref2)

    # Check 3: bf16 logits stay bf16 in HBM (half the bytes), f32 math in-kernel.
    xb = cls_score.astype(jnp.bfloat16)
    outb = jax.block_until_ready(cross_entropy_g_loss(xb, label))
    refb = _reference(xb, label)
    assert jnp.allclose(outb, refb, rtol=1e-4, atol=1e-4), (outb, refb)

    # Check 4: N not a multiple of 8 with default tiling -> single full-extent
    # block (block dims equal full array dims), no padding copy, no mask.
    out4 = jax.block_until_ready(
        cross_entropy_g_loss(x2, y2, loss_weight=0.5, penalty_weight=2.0))
    assert jnp.allclose(out4, ref2, rtol=1e-5, atol=1e-5), (out4, ref2)

    # Check 5: N larger than one tile and exactly divisible -> tile that
    # divides N (no padding) + 2-way parallel split across TensorCores.
    N5, C5 = 4096, 16
    x5 = jax.random.normal(k1, (N5, C5), dtype=jnp.float32)
    y5 = jax.random.randint(k2, (N5,), 0, C5, dtype=jnp.int32)
    out5 = jax.block_until_ready(cross_entropy_g_loss(x5, y5))
    ref5 = _reference(x5, y5)
    assert jnp.allclose(out5, ref5, rtol=1e-4, atol=1e-4), (out5, ref5)

    print("KERNEL_OK")
</pallas_src>

<mosaic_0001>
module attributes {stable_mosaic.version = 11 : i64} {
  func.func @_ce_g_loss_kernel(%arg0: i32, %arg1: i32, %arg2: memref<128x16xf32, #tpu.memory_space<vmem>>, %arg3: memref<128x1xi32, #tpu.memory_space<vmem>>, %arg4: memref<1x1xf32, #tpu.memory_space<smem>>, %arg5: memref<128x1xf32, #tpu.memory_space<vmem>>, %arg6: memref<128x1xf32, #tpu.memory_space<vmem>>) attributes {dimension_semantics = [#tpu.dimension_semantics<parallel>, #tpu.dimension_semantics<arbitrary>], iteration_bounds = array<i64: 1, 1>, scalar_prefetch = 0 : i64, scratch_operands = 2 : i64, tpu.core_type = #tpu.core_type<tc>, window_params = [{transform_indices = @transform_0, window_bounds = array<i64: 128, 16>}, {transform_indices = @transform_1, window_bounds = array<i64: 128, 1>}, {transform_indices = @transform_2, window_bounds = array<i64: 1, 1>}]} {
    %c0_i32 = arith.constant 0 : i32
    %0 = arith.cmpi eq, %arg1, %c0_i32 : i32
    %1 = arith.extui %0 : i1 to i32
    %c0_i32_0 = arith.constant 0 : i32
    %2 = arith.cmpi ne, %1, %c0_i32_0 : i32
    scf.if %2 {
      %cst_18 = arith.constant 0.000000e+00 : f32
      %34 = vector.broadcast %cst_18 : f32 to vector<128x1xf32>
      %c0_19 = arith.constant 0 : index
      %c0_20 = arith.constant 0 : index
      %35 = vector.load %arg5[%c0_19, %c0_20] : memref<128x1xf32, #tpu.memory_space<vmem>>, vector<128x1xf32>
      tpu.vector_store %arg5[%c0_19, %c0_20], %34 {strides = array<i32>} : memref<128x1xf32, #tpu.memory_space<vmem>>, vector<128x1xf32>,
      %cst_21 = arith.constant 0.000000e+00 : f32
      %36 = vector.broadcast %cst_21 : f32 to vector<128x1xf32>
      %c0_22 = arith.constant 0 : index
      %c0_23 = arith.constant 0 : index
      %37 = vector.load %arg6[%c0_22, %c0_23] : memref<128x1xf32, #tpu.memory_space<vmem>>, vector<128x1xf32>
      tpu.vector_store %arg6[%c0_22, %c0_23], %36 {strides = array<i32>} : memref<128x1xf32, #tpu.memory_space<vmem>>, vector<128x1xf32>,
    } else {
    }
    %c0 = arith.constant 0 : index
    %c0_1 = arith.constant 0 : index
    %3 = vector.load %arg2[%c0, %c0_1] : memref<128x16xf32, #tpu.memory_space<vmem>>, vector<128x16xf32>
    %c0_2 = arith.constant 0 : index
    %c0_3 = arith.constant 0 : index
    %4 = vector.load %arg3[%c0_2, %c0_3] : memref<128x1xi32, #tpu.memory_space<vmem>>, vector<128x1xi32>
    %cst = arith.constant dense<0xFF800000> : vector<128xf32>
    %5 = vector.multi_reduction <maximumf>, %3, %cst [1] : vector<128x16xf32> to vector<128xf32>
    %6 = vector.shape_cast %5 : vector<128xf32> to vector<128x1xf32>
    %7 = vector.broadcast %6 : vector<128x1xf32> to vector<128x16xf32>
    %8 = arith.subf %3, %7 : vector<128x16xf32>
    %9 = math.exp %8 : vector<128x16xf32>
    %cst_4 = arith.constant dense<0.000000e+00> : vector<128xf32>
    %10 = vector.multi_reduction <add>, %9, %cst_4 [1] : vector<128x16xf32> to vector<128xf32>
    %11 = vector.shape_cast %10 : vector<128xf32> to vector<128x1xf32>
    %12 = math.log %11 : vector<128x1xf32>
    %13 = arith.addf %12, %6 : vector<128x1xf32>
    %14 = tpu.iota {dimensions = array<i32: 1>} : vector<128x16xi32>
    %15 = vector.broadcast %4 : vector<128x1xi32> to vector<128x16xi32>
    %16 = arith.cmpi eq, %14, %15 : vector<128x16xi32>
    %cst_5 = arith.constant 0.000000e+00 : f32
    %17 = vector.broadcast %cst_5 : f32 to vector<128x16xf32>
    %18 = arith.select %16, %3, %17 : vector<128x16xi1>, vector<128x16xf32>
    %cst_6 = arith.constant dense<0.000000e+00> : vector<128xf32>
    %19 = vector.multi_reduction <add>, %18, %cst_6 [1] : vector<128x16xf32> to vector<128xf32>
    %20 = vector.shape_cast %19 : vector<128xf32> to vector<128x1xf32>
    %21 = arith.subf %13, %20 : vector<128x1xf32>
    %22 = arith.mulf %3, %3 : vector<128x16xf32>
    %cst_7 = arith.constant dense<0.000000e+00> : vector<128xf32>
    %23 = vector.multi_reduction <add>, %22, %cst_7 [1] : vector<128x16xf32> to vector<128xf32>
    %24 = vector.shape_cast %23 : vector<128xf32> to vector<128x1xf32>
    %c0_8 = arith.constant 0 : index
    %c0_9 = arith.constant 0 : index
    %25 = vector.load %arg5[%c0_8, %c0_9] : memref<128x1xf32, #tpu.memory_space<vmem>>, vector<128x1xf32>
    %26 = arith.addf %25, %21 : vector<128x1xf32>
    %c0_10 = arith.constant 0 : index
    %c0_11 = arith.constant 0 : index
    %27 = vector.load %arg5[%c0_10, %c0_11] : memref<128x1xf32, #tpu.memory_space<vmem>>, vector<128x1xf32>
    tpu.vector_store %arg5[%c0_10, %c0_11], %26 {strides = array<i32>} : memref<128x1xf32, #tpu.memory_space<vmem>>, vector<128x1xf32>,
    %c0_12 = arith.constant 0 : index
    %c0_13 = arith.constant 0 : index
    %28 = vector.load %arg6[%c0_12, %c0_13] : memref<128x1xf32, #tpu.memory_space<vmem>>, vector<128x1xf32>
    %29 = arith.addf %28, %24 : vector<128x1xf32>
    %c0_14 = arith.constant 0 : index
    %c0_15 = arith.constant 0 : index
    %30 = vector.load %arg6[%c0_14, %c0_15] : memref<128x1xf32, #tpu.memory_space<vmem>>, vector<128x1xf32>
    tpu.vector_store %arg6[%c0_14, %c0_15], %29 {strides = array<i32>} : memref<128x1xf32, #tpu.memory_space<vmem>>, vector<128x1xf32>,
    %c0_i32_16 = arith.constant 0 : i32
    %31 = arith.cmpi eq, %arg1, %c0_i32_16 : i32
    %32 = arith.extui %31 : i1 to i32
    %c0_i32_17 = arith.constant 0 : i32
    %33 = arith.cmpi ne, %32, %c0_i32_17 : i32
    scf.if %33 {
      %c0_18 = arith.constant 0 : index
      %c0_19 = arith.constant 0 : index
      %34 = vector.load %arg5[%c0_18, %c0_19] : memref<128x1xf32, #tpu.memory_space<vmem>>, vector<128x1xf32>
      %35 = vector.shape_cast %34 : vector<128x1xf32> to vector<1x128x1xf32>
      %cst_20 = arith.constant dense<0.000000e+00> : vector<1xf32>
      %36 = vector.multi_reduction <add>, %35, %cst_20 [1, 2] : vector<1x128x1xf32> to vector<1xf32>
      %37 = vector.shape_cast %36 : vector<1xf32> to vector<1x1x1xf32>
      %38 = vector.extract %37[0, 0, 0] : f32 from vector<1x1x1xf32>
      %c0_21 = arith.constant 0 : index
      %c0_22 = arith.constant 0 : index
      %39 = vector.load %arg6[%c0_21, %c0_22] : memref<128x1xf32, #tpu.memory_space<vmem>>, vector<128x1xf32>
      %40 = vector.shape_cast %39 : vector<128x1xf32> to vector<1x128x1xf32>
      %cst_23 = arith.constant dense<0.000000e+00> : vector<1xf32>
      %41 = vector.multi_reduction <add>, %40, %cst_23 [1, 2] : vector<1x128x1xf32> to vector<1xf32>
      %42 = vector.shape_cast %41 : vector<1xf32> to vector<1x1x1xf32>
      %43 = vector.extract %42[0, 0, 0] : f32 from vector<1x1x1xf32>
      %cst_24 = arith.constant 1.000000e+00 : f32
      %44 = arith.mulf %cst_24, %38 : f32
      %cst_25 = arith.constant 1.280000e+02 : f32
      %45 = arith.divf %44, %cst_25 : f32
      %cst_26 = arith.constant 1.000000e+00 : f32
      %46 = arith.mulf %cst_26, %43 : f32
      %cst_27 = arith.constant 2.048000e+03 : f32
      %47 = arith.divf %46, %cst_27 : f32
      %48 = arith.addf %45, %47 : f32
      %c0_28 = arith.constant 0 : index
      %c0_29 = arith.constant 0 : index
      %49 = memref.load %arg4[%c0_28, %c0_29] : memref<1x1xf32, #tpu.memory_space<smem>>
      memref.store %48, %arg4[%c0_28, %c0_29] : memref<1x1xf32, #tpu.memory_space<smem>>
    } else {
    }
    return
  }
  func.func @transform_0(%arg0: i32, %arg1: i32) -> (i32, i32) {
    %c1_i32 = arith.constant 1 : i32
    %0 = arith.muli %arg0, %c1_i32 : i32
    %1 = arith.addi %0, %arg1 : i32
    %c0_i32 = arith.constant 0 : i32
    %c0_i32_0 = arith.constant 0 : i32
    return %1, %c0_i32 : i32, i32
  }
  func.func @transform_1(%arg0: i32, %arg1: i32) -> (i32, i32) {
    %c1_i32 = arith.constant 1 : i32
    %0 = arith.muli %arg0, %c1_i32 : i32
    %1 = arith.addi %0, %arg1 : i32
    %c0_i32 = arith.constant 0 : i32
    %c0_i32_0 = arith.constant 0 : i32
    return %1, %c0_i32 : i32, i32
  }
  func.func @transform_2(%arg0: i32, %arg1: i32) -> (i32, i32) {
    %c0_i32 = arith.constant 0 : i32
    %c0_i32_0 = arith.constant 0 : i32
    return %arg0, %c0_i32 : i32, i32
  }
}

</mosaic_0001>

<llo_original>
// kernel: tpu_custom_call.1
$region0: #{tpu_custom_call.1}
  #allocation0 [shape = 'u32[]', space=smem, size = 0x4, offset = 0x4, fixed_abs, tag = 'smem constant byte address 0x4 - core index']
  #allocation1 [shape = 'u32[144,128]{1,0:T(1,128)}', space=vmem, size = 0x12000, scoped, tag = 'internal scratch']
  #allocation2 [shape = 'f32[128,1]{1,0:T(8,128)}', space=vmem, size = 0x10000, scoped, tag = 'scratch operand']
  #allocation3 [shape = 'f32[128,1]{1,0:T(8,128)}', space=vmem, size = 0x10000, scoped, tag = 'scratch operand']
  %s0 = inlined_call_operand.vmem [shape: f32[128,16], index: 0, kind: input, shape index: {}]
  %s1 = inlined_call_operand.vmem [shape: s32[128,1], index: 1, kind: input, shape index: {}]
  %s2 = inlined_call_operand.hbm [shape: f32[1,1], index: 2, kind: output, shape index: {}]
  %s3 = sld [smem:[#allocation0]]
  $region26: #{tpu_custom_call.1} parent=0
    _
  %s5 = ssub.s32 1, %s3
  %s6 = scalar_select 0, %s5, %s3
  $region1: #{tpu_custom_call.1} parent=0
    #allocation4 [shape = 'u8[512]{0}', space=smem, size = 0x200, scoped, tag = 'output window, operand 0, single buffered']
    #allocation5 [shape = 's32[1]{0}', space=sflag, size = 0x4, scoped, tag = 'scoped memory for tpu_custom_call.1']
    %7 = vsyncpa [#allocation5], 0
    // Predicated region
    $region2: #{tpu_custom_call.1} parent=1 // pred_check
      _
    $region3: #{tpu_custom_call.1} parent=1 // pred_check_branch
      %9 = sbr.rel (0) target = $region5
    $region4: #{tpu_custom_call.1} parent=1 // pred_region
      %s10 = sadd.s32 0, 0
      %s11 = smul.u32 16, %s10
      %p12 = scmp.lt.s32.totalorder %s11, 15
      %s13 = scalar_select %p12, %s11, 15
      %s14 = smul.addr %s13, 8
      %s15 = scalar_lea.vmem %s0, %s14
      %s16 = sadd.s32 0, 0
      %s17 = smul.u32 16, %s16
    $region5: #{tpu_custom_call.1} parent=1 // pred_fallthru
      _
    // Predicated region
    $region6: #{tpu_custom_call.1} parent=1 // pred_check
      _
    $region7: #{tpu_custom_call.1} parent=1 // pred_check_branch
      %19 = sbr.rel (0) target = $region9
    $region8: #{tpu_custom_call.1} parent=1 // pred_region
      %s20 = sadd.s32 0, 0
      %s21 = smul.u32 16, %s20
      %p22 = scmp.lt.s32.totalorder %s21, 15
      %s23 = scalar_select %p22, %s21, 15
      %s24 = smul.addr %s23, 8
      %s25 = scalar_lea.vmem %s1, %s24
      %s26 = sadd.s32 0, 0
      %s27 = smul.u32 16, %s26
    $region9: #{tpu_custom_call.1} parent=1 // pred_fallthru
      _
    %s28 = sadd.s32 0, 0
    %s29 = smul.u32 16, %s28
    %p30 = scmp.lt.s32.totalorder %s29, 15
    %s31 = scalar_select %p30, %s29, 15
    %s32 = smul.addr %s31, 8
    %s33 = scalar_lea.vmem %s0, %s32
    %s34 = sadd.s32 0, 0
    %s35 = smul.u32 16, %s34
    %p36 = scmp.lt.s32.totalorder %s35, 15
    %s37 = scalar_select %p36, %s35, 15
    %s38 = smul.addr %s37, 8
    %s39 = scalar_lea.vmem %s1, %s38
    %s40 = sadd.s32 0, 0
    %s41 = smul.u32 16, %s40
    %p42 = scmp.lt.s32.totalorder %s41, 15
    %s43 = scalar_select %p42, %s41, 15
    %s44 = smul.addr %s43, 8
    %s45 = scalar_lea.vmem %s0, %s44
    %s46 = sadd.s32 0, 0
    %s47 = smul.u32 16, %s46
    %s48 = sadd.s32 0, 0
    %s49 = smul.u32 16, %s48
    %p50 = scmp.lt.s32.totalorder %s49, 15
    %s51 = scalar_select %p50, %s49, 15
    %s52 = smul.addr %s51, 8
    %s53 = scalar_lea.vmem %s1, %s52
    %s54 = sadd.s32 0, 0
    %s55 = smul.u32 16, %s54
    %p56 = scmp.eq.s32.totalorder 0, 0
    // Predicated region
    $region10: #{tpu_custom_call.1} parent=1 // pred_check
      %p57 = pneg %p56
    $region11: #{tpu_custom_call.1} parent=1 // pred_check_branch
      %59 = sbr.rel (%p57) target = $region13
    $region12: #{tpu_custom_call.1} parent=1 // pred_region
      %vm60 = vcmask 7168
      %61 = vst.msk [vmem:[#allocation2] sm:$0xff] %vm60, 0.0
      %62 = vst.msk [vmem:[#allocation2 + $0x8] sm:$0xff] %vm60, 0.0
      %63 = vst.msk [vmem:[#allocation2 + $0x10] sm:$0xff] %vm60, 0.0
      %64 = vst.msk [vmem:[#allocation2 + $0x18] sm:$0xff] %vm60, 0.0
      %65 = vst.msk [vmem:[#allocation2 + $0x20] sm:$0xff] %vm60, 0.0
      %66 = vst.msk [vmem:[#allocation2 + $0x28] sm:$0xff] %vm60, 0.0
      %67 = vst.msk [vmem:[#allocation2 + $0x30] sm:$0xff] %vm60, 0.0
      %68 = vst.msk [vmem:[#allocation2 + $0x38] sm:$0xff] %vm60, 0.0
      %69 = vst.msk [vmem:[#allocation2 + $0x40] sm:$0xff] %vm60, 0.0
      %70 = vst.msk [vmem:[#allocation2 + $0x48] sm:$0xff] %vm60, 0.0
      %71 = vst.msk [vmem:[#allocation2 + $0x50] sm:$0xff] %vm60, 0.0
      %72 = vst.msk [vmem:[#allocation2 + $0x58] sm:$0xff] %vm60, 0.0
      %73 = vst.msk [vmem:[#allocation2 + $0x60] sm:$0xff] %vm60, 0.0
      %74 = vst.msk [vmem:[#allocation2 + $0x68] sm:$0xff] %vm60, 0.0
      %75 = vst.msk [vmem:[#allocation2 + $0x70] sm:$0xff] %vm60, 0.0
      %76 = vst.msk [vmem:[#allocation2 + $0x78] sm:$0xff] %vm60, 0.0
      %77 = vst.msk [vmem:[#allocation3] sm:$0xff] %vm60, 0.0
      %78 = vst.msk [vmem:[#allocation3 + $0x8] sm:$0xff] %vm60, 0.0
      %79 = vst.msk [vmem:[#allocation3 + $0x10] sm:$0xff] %vm60, 0.0
      %80 = vst.msk [vmem:[#allocation3 + $0x18] sm:$0xff] %vm60, 0.0
      %81 = vst.msk [vmem:[#allocation3 + $0x20] sm:$0xff] %vm60, 0.0
      %82 = vst.msk [vmem:[#allocation3 + $0x28] sm:$0xff] %vm60, 0.0
      %83 = vst.msk [vmem:[#allocation3 + $0x30] sm:$0xff] %vm60, 0.0
      %84 = vst.msk [vmem:[#allocation3 + $0x38] sm:$0xff] %vm60, 0.0
      %85 = vst.msk [vmem:[#allocation3 + $0x40] sm:$0xff] %vm60, 0.0
      %86 = vst.msk [vmem:[#allocation3 + $0x48] sm:$0xff] %vm60, 0.0
      %87 = vst.msk [vmem:[#allocation3 + $0x50] sm:$0xff] %vm60, 0.0
      %88 = vst.msk [vmem:[#allocation3 + $0x58] sm:$0xff] %vm60, 0.0
      %89 = vst.msk [vmem:[#allocation3 + $0x60] sm:$0xff] %vm60, 0.0
      %90 = vst.msk [vmem:[#allocation3 + $0x68] sm:$0xff] %vm60, 0.0
      %91 = vst.msk [vmem:[#allocation3 + $0x70] sm:$0xff] %vm60, 0.0
      %92 = vst.msk [vmem:[#allocation3 + $0x78] sm:$0xff] %vm60, 0.0
    $region13: #{tpu_custom_call.1} parent=1 // pred_fallthru
      _
    %v93 = vld [vmem:[%s45] sm:$0xff]
    %v94 = vld [vmem:[%s45 + $0x8] sm:$0xff]
    %v95 = vld [vmem:[%s45 + $0x10] sm:$0xff]
    %v96 = vld [vmem:[%s45 + $0x18] sm:$0xff]
    %v97 = vld [vmem:[%s45 + $0x20] sm:$0xff]
    %v98 = vld [vmem:[%s45 + $0x28] sm:$0xff]
    %v99 = vld [vmem:[%s45 + $0x30] sm:$0xff]
    %v100 = vld [vmem:[%s45 + $0x38] sm:$0xff]
    %v101 = vld [vmem:[%s45 + $0x40] sm:$0xff]
    %v102 = vld [vmem:[%s45 + $0x48] sm:$0xff]
    %v103 = vld [vmem:[%s45 + $0x50] sm:$0xff]
    %v104 = vld [vmem:[%s45 + $0x58] sm:$0xff]
    %v105 = vld [vmem:[%s45 + $0x60] sm:$0xff]
    %v106 = vld [vmem:[%s45 + $0x68] sm:$0xff]
    %v107 = vld [vmem:[%s45 + $0x70] sm:$0xff]
    %v108 = vld [vmem:[%s45 + $0x78] sm:$0xff]
    %v109 = vld [vmem:[%s53] sm:$0xff]
    %v110 = vld [vmem:[%s53 + $0x8] sm:$0xff]
    %v111 = vld [vmem:[%s53 + $0x10] sm:$0xff]
    %v112 = vld [vmem:[%s53 + $0x18] sm:$0xff]
    %v113 = vld [vmem:[%s53 + $0x20] sm:$0xff]
    %v114 = vld [vmem:[%s53 + $0x28] sm:$0xff]
    %v115 = vld [vmem:[%s53 + $0x30] sm:$0xff]
    %v116 = vld [vmem:[%s53 + $0x38] sm:$0xff]
    %v117 = vld [vmem:[%s53 + $0x40] sm:$0xff]
    %v118 = vld [vmem:[%s53 + $0x48] sm:$0xff]
    %v119 = vld [vmem:[%s53 + $0x50] sm:$0xff]
    %v120 = vld [vmem:[%s53 + $0x58] sm:$0xff]
    %v121 = vld [vmem:[%s53 + $0x60] sm:$0xff]
    %v122 = vld [vmem:[%s53 + $0x68] sm:$0xff]
    %v123 = vld [vmem:[%s53 + $0x70] sm:$0xff]
    %v124 = vld [vmem:[%s53 + $0x78] sm:$0xff]
    %vm125 = vcmask 130048
    %v126 = vsel %vm125, %v93, -inf
    %127 = vmax.xlane.f32.xlu0 %v126
    %v128 = vpop.xlane.xlu0 %127
    %v129 = vsel %vm125, %v94, -inf
    %130 = vmax.xlane.f32.xlu0 %v129
    %v131 = vpop.xlane.xlu0 %130
    %v132 = vsel %vm125, %v95, -inf
    %133 = vmax.xlane.f32.xlu0 %v132
    %v134 = vpop.xlane.xlu0 %133
    %v135 = vsel %vm125, %v96, -inf
    %136 = vmax.xlane.f32.xlu0 %v135
    %v137 = vpop.xlane.xlu0 %136
    %v138 = vsel %vm125, %v97, -inf
    %139 = vmax.xlane.f32.xlu0 %v138
    %v140 = vpop.xlane.xlu0 %139
    %v141 = vsel %vm125, %v98, -inf
    %142 = vmax.xlane.f32.xlu0 %v141
    %v143 = vpop.xlane.xlu0 %142
    %v144 = vsel %vm125, %v99, -inf
    %145 = vmax.xlane.f32.xlu0 %v144
    %v146 = vpop.xlane.xlu0 %145
    %v147 = vsel %vm125, %v100, -inf
    %148 = vmax.xlane.f32.xlu0 %v147
    %v149 = vpop.xlane.xlu0 %148
    %v150 = vsel %vm125, %v101, -inf
    %151 = vmax.xlane.f32.xlu0 %v150
    %v152 = vpop.xlane.xlu0 %151
    %v153 = vsel %vm125, %v102, -inf
    %154 = vmax.xlane.f32.xlu0 %v153
    %v155 = vpop.xlane.xlu0 %154
    %v156 = vsel %vm125, %v103, -inf
    %157 = vmax.xlane.f32.xlu0 %v156
    %v158 = vpop.xlane.xlu0 %157
    %v159 = vsel %vm125, %v104, -inf
    %160 = vmax.xlane.f32.xlu0 %v159
    %v161 = vpop.xlane.xlu0 %160
    %v162 = vsel %vm125, %v105, -inf
    %163 = vmax.xlane.f32.xlu0 %v162
    %v164 = vpop.xlane.xlu0 %163
    %v165 = vsel %vm125, %v106, -inf
    %166 = vmax.xlane.f32.xlu0 %v165
    %v167 = vpop.xlane.xlu0 %166
    %v168 = vsel %vm125, %v107, -inf
    %169 = vmax.xlane.f32.xlu0 %v168
    %v170 = vpop.xlane.xlu0 %169
    %v171 = vsel %vm125, %v108, -inf
    %172 = vmax.xlane.f32.xlu0 %v171
    %v173 = vpop.xlane.xlu0 %172
    %v174 = vsub.f32 %v93, %v128
    %v175 = vsub.f32 %v94, %v131
    %v176 = vsub.f32 %v95, %v134
    %v177 = vsub.f32 %v96, %v137
    %v178 = vsub.f32 %v97, %v140
    %v179 = vsub.f32 %v98, %v143
    %v180 = vsub.f32 %v99, %v146
    %v181 = vsub.f32 %v100, %v149
    %v182 = vsub.f32 %v101, %v152
    %v183 = vsub.f32 %v102, %v155
    %v184 = vsub.f32 %v103, %v158
    %v185 = vsub.f32 %v104, %v161
    %v186 = vsub.f32 %v105, %v164
    %v187 = vsub.f32 %v106, %v167
    %v188 = vsub.f32 %v107, %v170
    %v189 = vsub.f32 %v108, %v173
    %v190 = vmul.f32 %v174, 1.442695
    %v191 = vpow.pop %v190
    %v192 = vmul.f32 %v175, 1.442695
    %v193 = vpow.pop %v192
    %v194 = vmul.f32 %v176, 1.442695
    %v195 = vpow.pop %v194
    %v196 = vmul.f32 %v177, 1.442695
    %v197 = vpow.pop %v196
    %v198 = vmul.f32 %v178, 1.442695
    %v199 = vpow.pop %v198
    %v200 = vmul.f32 %v179, 1.442695
    %v201 = vpow.pop %v200
    %v202 = vmul.f32 %v180, 1.442695
    %v203 = vpow.pop %v202
    %v204 = vmul.f32 %v181, 1.442695
    %v205 = vpow.pop %v204
    %v206 = vmul.f32 %v182, 1.442695
    %v207 = vpow.pop %v206
    %v208 = vmul.f32 %v183, 1.442695
    %v209 = vpow.pop %v208
    %v210 = vmul.f32 %v184, 1.442695
    %v211 = vpow.pop %v210
    %v212 = vmul.f32 %v185, 1.442695
    %v213 = vpow.pop %v212
    %v214 = vmul.f32 %v186, 1.442695
    %v215 = vpow.pop %v214
    %v216 = vmul.f32 %v187, 1.442695
    %v217 = vpow.pop %v216
    %v218 = vmul.f32 %v188, 1.442695
    %v219 = vpow.pop %v218
    %v220 = vmul.f32 %v189, 1.442695
    %v221 = vpow.pop %v220
    %v222 = vsel %vm125, %v191, 0.0
    %223 = vadd.xlane.f32.xlu0 %v222
    %v224 = vpop.xlane.xlu0 %223
    %v225 = vsel %vm125, %v193, 0.0
    %226 = vadd.xlane.f32.xlu0 %v225
    %v227 = vpop.xlane.xlu0 %226
    %v228 = vsel %vm125, %v195, 0.0
    %229 = vadd.xlane.f32.xlu0 %v228
    %v230 = vpop.xlane.xlu0 %229
    %v231 = vsel %vm125, %v197, 0.0
    %232 = vadd.xlane.f32.xlu0 %v231
    %v233 = vpop.xlane.xlu0 %232
    %v234 = vsel %vm125, %v199, 0.0
    %235 = vadd.xlane.f32.xlu0 %v234
    %v236 = vpop.xlane.xlu0 %235
    %v237 = vsel %vm125, %v201, 0.0
    %238 = vadd.xlane.f32.xlu0 %v237
    %v239 = vpop.xlane.xlu0 %238
    %v240 = vsel %vm125, %v203, 0.0
    %241 = vadd.xlane.f32.xlu0 %v240
    %v242 = vpop.xlane.xlu0 %241
    %v243 = vsel %vm125, %v205, 0.0
    %244 = vadd.xlane.f32.xlu0 %v243
    %v245 = vpop.xlane.xlu0 %244
    %v246 = vsel %vm125, %v207, 0.0
    %247 = vadd.xlane.f32.xlu0 %v246
    %v248 = vpop.xlane.xlu0 %247
    %v249 = vsel %vm125, %v209, 0.0
    %250 = vadd.xlane.f32.xlu0 %v249
    %v251 = vpop.xlane.xlu0 %250
    %v252 = vsel %vm125, %v211, 0.0
    %253 = vadd.xlane.f32.xlu0 %v252
    %v254 = vpop.xlane.xlu0 %253
    %v255 = vsel %vm125, %v213, 0.0
    %256 = vadd.xlane.f32.xlu0 %v255
    %v257 = vpop.xlane.xlu0 %256
    %v258 = vsel %vm125, %v215, 0.0
    %259 = vadd.xlane.f32.xlu0 %v258
    %v260 = vpop.xlane.xlu0 %259
    %v261 = vsel %vm125, %v217, 0.0
    %262 = vadd.xlane.f32.xlu0 %v261
    %v263 = vpop.xlane.xlu0 %262
    %v264 = vsel %vm125, %v219, 0.0
    %265 = vadd.xlane.f32.xlu0 %v264
    %v266 = vpop.xlane.xlu0 %265
    %v267 = vsel %vm125, %v221, 0.0
    %268 = vadd.xlane.f32.xlu0 %v267
    %v269 = vpop.xlane.xlu0 %268
    %v270 = vlog2.pop %v224
    %v271 = vmul.f32 %v270, 0.6931472
    %v272 = vlog2.pop %v227
    %v273 = vmul.f32 %v272, 0.6931472
    %v274 = vlog2.pop %v230
    %v275 = vmul.f32 %v274, 0.6931472
    %v276 = vlog2.pop %v233
    %v277 = vmul.f32 %v276, 0.6931472
    %v278 = vlog2.pop %v236
    %v279 = vmul.f32 %v278, 0.6931472
    %v280 = vlog2.pop %v239
    %v281 = vmul.f32 %v280, 0.6931472
    %v282 = vlog2.pop %v242
    %v283 = vmul.f32 %v282, 0.6931472
    %v284 = vlog2.pop %v245
    %v285 = vmul.f32 %v284, 0.6931472
    %v286 = vlog2.pop %v248
    %v287 = vmul.f32 %v286, 0.6931472
    %v288 = vlog2.pop %v251
    %v289 = vmul.f32 %v288, 0.6931472
    %v290 = vlog2.pop %v254
    %v291 = vmul.f32 %v290, 0.6931472
    %v292 = vlog2.pop %v257
    %v293 = vmul.f32 %v292, 0.6931472
    %v294 = vlog2.pop %v260
    %v295 = vmul.f32 %v294, 0.6931472
    %v296 = vlog2.pop %v263
    %v297 = vmul.f32 %v296, 0.6931472
    %v298 = vlog2.pop %v266
    %v299 = vmul.f32 %v298, 0.6931472
    %v300 = vlog2.pop %v269
    %v301 = vmul.f32 %v300, 0.6931472
    %v302 = vadd.f32 %v271, %v128
    %v303 = vadd.f32 %v273, %v131
    %v304 = vadd.f32 %v275, %v134
    %v305 = vadd.f32 %v277, %v137
    %v306 = vadd.f32 %v279, %v140
    %v307 = vadd.f32 %v281, %v143
    %v308 = vadd.f32 %v283, %v146
    %v309 = vadd.f32 %v285, %v149
    %v310 = vadd.f32 %v287, %v152
    %v311 = vadd.f32 %v289, %v155
    %v312 = vadd.f32 %v291, %v158
    %v313 = vadd.f32 %v293, %v161
    %v314 = vadd.f32 %v295, %v164
    %v315 = vadd.f32 %v297, %v167
    %v316 = vadd.f32 %v299, %v170
    %v317 = vadd.f32 %v301, %v173
    %v318 = vlaneseq
    %v319 = vand.u32 %v318, 127
    %320 = vset.pattern.permute.xlu0 0
    %321 = vperm.xlu0 %320, %v109
    %v322 = vpop.permute.xlu0 %321
    %323 = vset.pattern.permute.xlu0 0
    %324 = vperm.xlu0 %323, %v110
    %v325 = vpop.permute.xlu0 %324
    %326 = vset.pattern.permute.xlu0 0
    %327 = vperm.xlu0 %326, %v111
    %v328 = vpop.permute.xlu0 %327
    %329 = vset.pattern.permute.xlu0 0
    %330 = vperm.xlu0 %329, %v112
    %v331 = vpop.permute.xlu0 %330
    %332 = vset.pattern.permute.xlu0 0
    %333 = vperm.xlu0 %332, %v113
    %v334 = vpop.permute.xlu0 %333
    %335 = vset.pattern.permute.xlu0 0
    %336 = vperm.xlu0 %335, %v114
    %v337 = vpop.permute.xlu0 %336
    %338 = vset.pattern.permute.xlu0 0
    %339 = vperm.xlu0 %338, %v115
    %v340 = vpop.permute.xlu0 %339
    %341 = vset.pattern.permute.xlu0 0
    %342 = vperm.xlu0 %341, %v116
    %v343 = vpop.permute.xlu0 %342
    %344 = vset.pattern.permute.xlu0 0
    %345 = vperm.xlu0 %344, %v117
    %v346 = vpop.permute.xlu0 %345
    %347 = vset.pattern.permute.xlu0 0
    %348 = vperm.xlu0 %347, %v118
    %v349 = vpop.permute.xlu0 %348
    %350 = vset.pattern.permute.xlu0 0
    %351 = vperm.xlu0 %350, %v119
    %v352 = vpop.permute.xlu0 %351
    %353 = vset.pattern.permute.xlu0 0
    %354 = vperm.xlu0 %353, %v120
    %v355 = vpop.permute.xlu0 %354
    %356 = vset.pattern.permute.xlu0 0
    %357 = vperm.xlu0 %356, %v121
    %v358 = vpop.permute.xlu0 %357
    %359 = vset.pattern.permute.xlu0 0
    %360 = vperm.xlu0 %359, %v122
    %v361 = vpop.permute.xlu0 %360
    %362 = vset.pattern.permute.xlu0 0
    %363 = vperm.xlu0 %362, %v123
    %v364 = vpop.permute.xlu0 %363
    %365 = vset.pattern.permute.xlu0 0
    %366 = vperm.xlu0 %365, %v124
    %v367 = vpop.permute.xlu0 %366
    %vm368 = vcmp.eq.s32.totalorder %v319, %v322
    %vm369 = vcmp.eq.s32.totalorder %v319, %v325
    %vm370 = vcmp.eq.s32.totalorder %v319, %v328
    %vm371 = vcmp.eq.s32.totalorder %v319, %v331
    %vm372 = vcmp.eq.s32.totalorder %v319, %v334
    %vm373 = vcmp.eq.s32.totalorder %v319, %v337
    %vm374 = vcmp.eq.s32.totalorder %v319, %v340
    %vm375 = vcmp.eq.s32.totalorder %v319, %v343
    %vm376 = vcmp.eq.s32.totalorder %v319, %v346
    %vm377 = vcmp.eq.s32.totalorder %v319, %v349
    %vm378 = vcmp.eq.s32.totalorder %v319, %v352
    %vm379 = vcmp.eq.s32.totalorder %v319, %v355
    %vm380 = vcmp.eq.s32.totalorder %v319, %v358
    %vm381 = vcmp.eq.s32.totalorder %v319, %v361
    %vm382 = vcmp.eq.s32.totalorder %v319, %v364
    %vm383 = vcmp.eq.s32.totalorder %v319, %v367
    %v384 = vsel %vm368, %v93, 0.0
    %v385 = vsel %vm369, %v94, 0.0
    %v386 = vsel %vm370, %v95, 0.0
    %v387 = vsel %vm371, %v96, 0.0
    %v388 = vsel %vm372, %v97, 0.0
    %v389 = vsel %vm373, %v98, 0.0
    %v390 = vsel %vm374, %v99, 0.0
    %v391 = vsel %vm375, %v100, 0.0
    %v392 = vsel %vm376, %v101, 0.0
    %v393 = vsel %vm377, %v102, 0.0
    %v394 = vsel %vm378, %v103, 0.0
    %v395 = vsel %vm379, %v104, 0.0
    %v396 = vsel %vm380, %v105, 0.0
    %v397 = vsel %vm381, %v106, 0.0
    %v398 = vsel %vm382, %v107, 0.0
    %v399 = vsel %vm383, %v108, 0.0
    %v400 = vsel %vm125, %v384, 0.0
    %401 = vadd.xlane.f32.xlu0 %v400
    %v402 = vpop.xlane.xlu0 %401
    %v403 = vsel %vm125, %v385, 0.0
    %404 = vadd.xlane.f32.xlu0 %v403
    %v405 = vpop.xlane.xlu0 %404
    %v406 = vsel %vm125, %v386, 0.0
    %407 = vadd.xlane.f32.xlu0 %v406
    %v408 = vpop.xlane.xlu0 %407
    %v409 = vsel %vm125, %v387, 0.0
    %410 = vadd.xlane.f32.xlu0 %v409
    %v411 = vpop.xlane.xlu0 %410
    %v412 = vsel %vm125, %v388, 0.0
    %413 = vadd.xlane.f32.xlu0 %v412
    %v414 = vpop.xlane.xlu0 %413
    %v415 = vsel %vm125, %v389, 0.0
    %416 = vadd.xlane.f32.xlu0 %v415
    %v417 = vpop.xlane.xlu0 %416
    %v418 = vsel %vm125, %v390, 0.0
    %419 = vadd.xlane.f32.xlu0 %v418
    %v420 = vpop.xlane.xlu0 %419
    %v421 = vsel %vm125, %v391, 0.0
    %422 = vadd.xlane.f32.xlu0 %v421
    %v423 = vpop.xlane.xlu0 %422
    %v424 = vsel %vm125, %v392, 0.0
    %425 = vadd.xlane.f32.xlu0 %v424
    %v426 = vpop.xlane.xlu0 %425
    %v427 = vsel %vm125, %v393, 0.0
    %428 = vadd.xlane.f32.xlu0 %v427
    %v429 = vpop.xlane.xlu0 %428
    %v430 = vsel %vm125, %v394, 0.0
    %431 = vadd.xlane.f32.xlu0 %v430
    %v432 = vpop.xlane.xlu0 %431
    %v433 = vsel %vm125, %v395, 0.0
    %434 = vadd.xlane.f32.xlu0 %v433
    %v435 = vpop.xlane.xlu0 %434
    %v436 = vsel %vm125, %v396, 0.0
    %437 = vadd.xlane.f32.xlu0 %v436
    %v438 = vpop.xlane.xlu0 %437
    %v439 = vsel %vm125, %v397, 0.0
    %440 = vadd.xlane.f32.xlu0 %v439
    %v441 = vpop.xlane.xlu0 %440
    %v442 = vsel %vm125, %v398, 0.0
    %443 = vadd.xlane.f32.xlu0 %v442
    %v444 = vpop.xlane.xlu0 %443
    %v445 = vsel %vm125, %v399, 0.0
    %446 = vadd.xlane.f32.xlu0 %v445
    %v447 = vpop.xlane.xlu0 %446
    %v448 = vsub.f32 %v302, %v402
    %v449 = vsub.f32 %v303, %v405
    %v450 = vsub.f32 %v304, %v408
    %v451 = vsub.f32 %v305, %v411
    %v452 = vsub.f32 %v306, %v414
    %v453 = vsub.f32 %v307, %v417
    %v454 = vsub.f32 %v308, %v420
    %v455 = vsub.f32 %v309, %v423
    %v456 = vsub.f32 %v310, %v426
    %v457 = vsub.f32 %v311, %v429
    %v458 = vsub.f32 %v312, %v432
    %v459 = vsub.f32 %v313, %v435
    %v460 = vsub.f32 %v314, %v438
    %v461 = vsub.f32 %v315, %v441
    %v462 = vsub.f32 %v316, %v444
    %v463 = vsub.f32 %v317, %v447
    %v464 = vmul.f32 %v93, %v93
    %v465 = vmul.f32 %v94, %v94
    %v466 = vmul.f32 %v95, %v95
    %v467 = vmul.f32 %v96, %v96
    %v468 = vmul.f32 %v97, %v97
    %v469 = vmul.f32 %v98, %v98
    %v470 = vmul.f32 %v99, %v99
    %v471 = vmul.f32 %v100, %v100
    %v472 = vmul.f32 %v101, %v101
    %v473 = vmul.f32 %v102, %v102
    %v474 = vmul.f32 %v103, %v103
    %v475 = vmul.f32 %v104, %v104
    %v476 = vmul.f32 %v105, %v105
    %v477 = vmul.f32 %v106, %v106
    %v478 = vmul.f32 %v107, %v107
    %v479 = vmul.f32 %v108, %v108
    %v480 = vsel %vm125, %v464, 0.0
    %481 = vadd.xlane.f32.xlu0 %v480
    %v482 = vpop.xlane.xlu0 %481
    %v483 = vsel %vm125, %v465, 0.0
    %484 = vadd.xlane.f32.xlu0 %v483
    %v485 = vpop.xlane.xlu0 %484
    %v486 = vsel %vm125, %v466, 0.0
    %487 = vadd.xlane.f32.xlu0 %v486
    %v488 = vpop.xlane.xlu0 %487
    %v489 = vsel %vm125, %v467, 0.0
    %490 = vadd.xlane.f32.xlu0 %v489
    %v491 = vpop.xlane.xlu0 %490
    %v492 = vsel %vm125, %v468, 0.0
    %493 = vadd.xlane.f32.xlu0 %v492
    %v494 = vpop.xlane.xlu0 %493
    %v495 = vsel %vm125, %v469, 0.0
    %496 = vadd.xlane.f32.xlu0 %v495
    %v497 = vpop.xlane.xlu0 %496
    %v498 = vsel %vm125, %v470, 0.0
    %499 = vadd.xlane.f32.xlu0 %v498
    %v500 = vpop.xlane.xlu0 %499
    %v501 = vsel %vm125, %v471, 0.0
    %502 = vadd.xlane.f32.xlu0 %v501
    %v503 = vpop.xlane.xlu0 %502
    %v504 = vsel %vm125, %v472, 0.0
    %505 = vadd.xlane.f32.xlu0 %v504
    %v506 = vpop.xlane.xlu0 %505
    %v507 = vsel %vm125, %v473, 0.0
    %508 = vadd.xlane.f32.xlu0 %v507
    %v509 = vpop.xlane.xlu0 %508
    %v510 = vsel %vm125, %v474, 0.0
    %511 = vadd.xlane.f32.xlu0 %v510
    %v512 = vpop.xlane.xlu0 %511
    %v513 = vsel %vm125, %v475, 0.0
    %514 = vadd.xlane.f32.xlu0 %v513
    %v515 = vpop.xlane.xlu0 %514
    %v516 = vsel %vm125, %v476, 0.0
    %517 = vadd.xlane.f32.xlu0 %v516
    %v518 = vpop.xlane.xlu0 %517
    %v519 = vsel %vm125, %v477, 0.0
    %520 = vadd.xlane.f32.xlu0 %v519
    %v521 = vpop.xlane.xlu0 %520
    %v522 = vsel %vm125, %v478, 0.0
    %523 = vadd.xlane.f32.xlu0 %v522
    %v524 = vpop.xlane.xlu0 %523
    %v525 = vsel %vm125, %v479, 0.0
    %526 = vadd.xlane.f32.xlu0 %v525
    %v527 = vpop.xlane.xlu0 %526
    %v528 = vld [vmem:[#allocation2] sm:$0xff]
    %v529 = vld [vmem:[#allocation2 + $0x8] sm:$0xff]
    %v530 = vld [vmem:[#allocation2 + $0x10] sm:$0xff]
    %v531 = vld [vmem:[#allocation2 + $0x18] sm:$0xff]
    %v532 = vld [vmem:[#allocation2 + $0x20] sm:$0xff]
    %v533 = vld [vmem:[#allocation2 + $0x28] sm:$0xff]
    %v534 = vld [vmem:[#allocation2 + $0x30] sm:$0xff]
    %v535 = vld [vmem:[#allocation2 + $0x38] sm:$0xff]
    %v536 = vld [vmem:[#allocation2 + $0x40] sm:$0xff]
    %v537 = vld [vmem:[#allocation2 + $0x48] sm:$0xff]
    %v538 = vld [vmem:[#allocation2 + $0x50] sm:$0xff]
    %v539 = vld [vmem:[#allocation2 + $0x58] sm:$0xff]
    %v540 = vld [vmem:[#allocation2 + $0x60] sm:$0xff]
    %v541 = vld [vmem:[#allocation2 + $0x68] sm:$0xff]
    %v542 = vld [vmem:[#allocation2 + $0x70] sm:$0xff]
    %v543 = vld [vmem:[#allocation2 + $0x78] sm:$0xff]
    %v544 = vadd.f32 %v528, %v448
    %v545 = vadd.f32 %v529, %v449
    %v546 = vadd.f32 %v530, %v450
    %v547 = vadd.f32 %v531, %v451
    %v548 = vadd.f32 %v532, %v452
    %v549 = vadd.f32 %v533, %v453
    %v550 = vadd.f32 %v534, %v454
    %v551 = vadd.f32 %v535, %v455
    %v552 = vadd.f32 %v536, %v456
    %v553 = vadd.f32 %v537, %v457
    %v554 = vadd.f32 %v538, %v458
    %v555 = vadd.f32 %v539, %v459
    %v556 = vadd.f32 %v540, %v460
    %v557 = vadd.f32 %v541, %v461
    %v558 = vadd.f32 %v542, %v462
    %v559 = vadd.f32 %v543, %v463
    %vm560 = vcmask 7168
    %561 = vst.msk [vmem:[#allocation2] sm:$0xff] %vm560, %v544
    %562 = vst.msk [vmem:[#allocation2 + $0x8] sm:$0xff] %vm560, %v545
    %563 = vst.msk [vmem:[#allocation2 + $0x10] sm:$0xff] %vm560, %v546
    %564 = vst.msk [vmem:[#allocation2 + $0x18] sm:$0xff] %vm560, %v547
    %565 = vst.msk [vmem:[#allocation2 + $0x20] sm:$0xff] %vm560, %v548
    %566 = vst.msk [vmem:[#allocation2 + $0x28] sm:$0xff] %vm560, %v549
    %567 = vst.msk [vmem:[#allocation2 + $0x30] sm:$0xff] %vm560, %v550
    %568 = vst.msk [vmem:[#allocation2 + $0x38] sm:$0xff] %vm560, %v551
    %569 = vst.msk [vmem:[#allocation2 + $0x40] sm:$0xff] %vm560, %v552
    %570 = vst.msk [vmem:[#allocation2 + $0x48] sm:$0xff] %vm560, %v553
    %571 = vst.msk [vmem:[#allocation2 + $0x50] sm:$0xff] %vm560, %v554
    %572 = vst.msk [vmem:[#allocation2 + $0x58] sm:$0xff] %vm560, %v555
    %573 = vst.msk [vmem:[#allocation2 + $0x60] sm:$0xff] %vm560, %v556
    %574 = vst.msk [vmem:[#allocation2 + $0x68] sm:$0xff] %vm560, %v557
    %575 = vst.msk [vmem:[#allocation2 + $0x70] sm:$0xff] %vm560, %v558
    %576 = vst.msk [vmem:[#allocation2 + $0x78] sm:$0xff] %vm560, %v559
    %v577 = vld [vmem:[#allocation3] sm:$0xff]
    %v578 = vld [vmem:[#allocation3 + $0x8] sm:$0xff]
    %v579 = vld [vmem:[#allocation3 + $0x10] sm:$0xff]
    %v580 = vld [vmem:[#allocation3 + $0x18] sm:$0xff]
    %v581 = vld [vmem:[#allocation3 + $0x20] sm:$0xff]
    %v582 = vld [vmem:[#allocation3 + $0x28] sm:$0xff]
    %v583 = vld [vmem:[#allocation3 + $0x30] sm:$0xff]
    %v584 = vld [vmem:[#allocation3 + $0x38] sm:$0xff]
    %v585 = vld [vmem:[#allocation3 + $0x40] sm:$0xff]
    %v586 = vld [vmem:[#allocation3 + $0x48] sm:$0xff]
    %v587 = vld [vmem:[#allocation3 + $0x50] sm:$0xff]
    %v588 = vld [vmem:[#allocation3 + $0x58] sm:$0xff]
    %v589 = vld [vmem:[#allocation3 + $0x60] sm:$0xff]
    %v590 = vld [vmem:[#allocation3 + $0x68] sm:$0xff]
    %v591 = vld [vmem:[#allocation3 + $0x70] sm:$0xff]
    %v592 = vld [vmem:[#allocation3 + $0x78] sm:$0xff]
    %v593 = vadd.f32 %v577, %v482
    %v594 = vadd.f32 %v578, %v485
    %v595 = vadd.f32 %v579, %v488
    %v596 = vadd.f32 %v580, %v491
    %v597 = vadd.f32 %v581, %v494
    %v598 = vadd.f32 %v582, %v497
    %v599 = vadd.f32 %v583, %v500
    %v600 = vadd.f32 %v584, %v503
    %v601 = vadd.f32 %v585, %v506
    %v602 = vadd.f32 %v586, %v509
    %v603 = vadd.f32 %v587, %v512
    %v604 = vadd.f32 %v588, %v515
    %v605 = vadd.f32 %v589, %v518
    %v606 = vadd.f32 %v590, %v521
    %v607 = vadd.f32 %v591, %v524
    %v608 = vadd.f32 %v592, %v527
    %609 = vst.msk [vmem:[#allocation3] sm:$0xff] %vm560, %v593
    %610 = vst.msk [vmem:[#allocation3 + $0x8] sm:$0xff] %vm560, %v594
    %611 = vst.msk [vmem:[#allocation3 + $0x10] sm:$0xff] %vm560, %v595
    %612 = vst.msk [vmem:[#allocation3 + $0x18] sm:$0xff] %vm560, %v596
    %613 = vst.msk [vmem:[#allocation3 + $0x20] sm:$0xff] %vm560, %v597
    %614 = vst.msk [vmem:[#allocation3 + $0x28] sm:$0xff] %vm560, %v598
    %615 = vst.msk [vmem:[#allocation3 + $0x30] sm:$0xff] %vm560, %v599
    %616 = vst.msk [vmem:[#allocation3 + $0x38] sm:$0xff] %vm560, %v600
    %617 = vst.msk [vmem:[#allocation3 + $0x40] sm:$0xff] %vm560, %v601
    %618 = vst.msk [vmem:[#allocation3 + $0x48] sm:$0xff] %vm560, %v602
    %619 = vst.msk [vmem:[#allocation3 + $0x50] sm:$0xff] %vm560, %v603
    %620 = vst.msk [vmem:[#allocation3 + $0x58] sm:$0xff] %vm560, %v604
    %621 = vst.msk [vmem:[#allocation3 + $0x60] sm:$0xff] %vm560, %v605
    %622 = vst.msk [vmem:[#allocation3 + $0x68] sm:$0xff] %vm560, %v606
    %623 = vst.msk [vmem:[#allocation3 + $0x70] sm:$0xff] %vm560, %v607
    %624 = vst.msk [vmem:[#allocation3 + $0x78] sm:$0xff] %vm560, %v608
    // Predicated region
    $region14: #{tpu_custom_call.1} parent=1 // pred_check
      %p625 = pneg %p56
    $region15: #{tpu_custom_call.1} parent=1 // pred_check_branch
      %627 = sbr.rel (%p625) target = $region17
    $region16: #{tpu_custom_call.1} parent=1 // pred_region
      %v628 = vld [vmem:[#allocation2] sm:$0xff]
      %v629 = vld [vmem:[#allocation2 + $0x8] sm:$0xff]
      %v630 = vld [vmem:[#allocation2 + $0x10] sm:$0xff]
      %v631 = vld [vmem:[#allocation2 + $0x18] sm:$0xff]
      %v632 = vld [vmem:[#allocation2 + $0x20] sm:$0xff]
      %v633 = vld [vmem:[#allocation2 + $0x28] sm:$0xff]
      %v634 = vld [vmem:[#allocation2 + $0x30] sm:$0xff]
      %v635 = vld [vmem:[#allocation2 + $0x38] sm:$0xff]
      %v636 = vld [vmem:[#allocation2 + $0x40] sm:$0xff]
      %v637 = vld [vmem:[#allocation2 + $0x48] sm:$0xff]
      %v638 = vld [vmem:[#allocation2 + $0x50] sm:$0xff]
      %v639 = vld [vmem:[#allocation2 + $0x58] sm:$0xff]
      %v640 = vld [vmem:[#allocation2 + $0x60] sm:$0xff]
      %v641 = vld [vmem:[#allocation2 + $0x68] sm:$0xff]
      %v642 = vld [vmem:[#allocation2 + $0x70] sm:$0xff]
      %v643 = vld [vmem:[#allocation2 + $0x78] sm:$0xff]
      %v644 = vsel %vm560, %v628, 0.0
      %v645 = vsel %vm560, %v629, 0.0
      %v646 = vadd.f32 %v644, %v645
      %v647 = vsel %vm560, %v630, 0.0
      %v648 = vadd.f32 %v646, %v647
      %v649 = vsel %vm560, %v631, 0.0
      %v650 = vadd.f32 %v648, %v649
      %v651 = vsel %vm560, %v632, 0.0
      %v652 = vadd.f32 %v650, %v651
      %v653 = vsel %vm560, %v633, 0.0
      %v654 = vadd.f32 %v652, %v653
      %v655 = vsel %vm560, %v634, 0.0
      %v656 = vadd.f32 %v654, %v655
      %v657 = vsel %vm560, %v635, 0.0
      %v658 = vadd.f32 %v656, %v657
      %v659 = vsel %vm560, %v636, 0.0
      %v660 = vadd.f32 %v658, %v659
      %v661 = vsel %vm560, %v637, 0.0
      %v662 = vadd.f32 %v660, %v661
      %v663 = vsel %vm560, %v638, 0.0
      %v664 = vadd.f32 %v662, %v663
      %v665 = vsel %vm560, %v639, 0.0
      %v666 = vadd.f32 %v664, %v665
      %v667 = vsel %vm560, %v640, 0.0
      %v668 = vadd.f32 %v666, %v667
      %v669 = vsel %vm560, %v641, 0.0
      %v670 = vadd.f32 %v668, %v669
      %v671 = vsel %vm560, %v642, 0.0
      %v672 = vadd.f32 %v670, %v671
      %v673 = vsel %vm560, %v643, 0.0
      %v674 = vadd.f32 %v672, %v673
      %675 = vadd.xlane.f32.xlu0 %v674
      %v676 = vpop.xlane.xlu0 %675
      %v677 = vrot.slane %v676, 4
      %v678 = vadd.f32 %v676, %v677
      %v679 = vrot.slane %v678, 2
      %v680 = vadd.f32 %v678, %v679
      %v681 = vrot.slane %v680, 1
      %v682 = vadd.f32 %v680, %v681
      %s683 = vtos %v682
      %v684 = vld [vmem:[#allocation3] sm:$0xff]
      %v685 = vld [vmem:[#allocation3 + $0x8] sm:$0xff]
      %v686 = vld [vmem:[#allocation3 + $0x10] sm:$0xff]
      %v687 = vld [vmem:[#allocation3 + $0x18] sm:$0xff]
      %v688 = vld [vmem:[#allocation3 + $0x20] sm:$0xff]
      %v689 = vld [vmem:[#allocation3 + $0x28] sm:$0xff]
      %v690 = vld [vmem:[#allocation3 + $0x30] sm:$0xff]
      %v691 = vld [vmem:[#allocation3 + $0x38] sm:$0xff]
      %v692 = vld [vmem:[#allocation3 + $0x40] sm:$0xff]
      %v693 = vld [vmem:[#allocation3 + $0x48] sm:$0xff]
      %v694 = vld [vmem:[#allocation3 + $0x50] sm:$0xff]
      %v695 = vld [vmem:[#allocation3 + $0x58] sm:$0xff]
      %v696 = vld [vmem:[#allocation3 + $0x60] sm:$0xff]
      %v697 = vld [vmem:[#allocation3 + $0x68] sm:$0xff]
      %v698 = vld [vmem:[#allocation3 + $0x70] sm:$0xff]
      %v699 = vld [vmem:[#allocation3 + $0x78] sm:$0xff]
      %v700 = vsel %vm560, %v684, 0.0
      %v701 = vsel %vm560, %v685, 0.0
      %v702 = vadd.f32 %v700, %v701
      %v703 = vsel %vm560, %v686, 0.0
      %v704 = vadd.f32 %v702, %v703
      %v705 = vsel %vm560, %v687, 0.0
      %v706 = vadd.f32 %v704, %v705
      %v707 = vsel %vm560, %v688, 0.0
      %v708 = vadd.f32 %v706, %v707
      %v709 = vsel %vm560, %v689, 0.0
      %v710 = vadd.f32 %v708, %v709
      %v711 = vsel %vm560, %v690, 0.0
      %v712 = vadd.f32 %v710, %v711
      %v713 = vsel %vm560, %v691, 0.0
      %v714 = vadd.f32 %v712, %v713
      %v715 = vsel %vm560, %v692, 0.0
      %v716 = vadd.f32 %v714, %v715
      %v717 = vsel %vm560, %v693, 0.0
      %v718 = vadd.f32 %v716, %v717
      %v719 = vsel %vm560, %v694, 0.0
      %v720 = vadd.f32 %v718, %v719
      %v721 = vsel %vm560, %v695, 0.0
      %v722 = vadd.f32 %v720, %v721
      %v723 = vsel %vm560, %v696, 0.0
      %v724 = vadd.f32 %v722, %v723
      %v725 = vsel %vm560, %v697, 0.0
      %v726 = vadd.f32 %v724, %v725
      %v727 = vsel %vm560, %v698, 0.0
      %v728 = vadd.f32 %v726, %v727
      %v729 = vsel %vm560, %v699, 0.0
      %v730 = vadd.f32 %v728, %v729
      %731 = vadd.xlane.f32.xlu0 %v730
      %v732 = vpop.xlane.xlu0 %731
      %v733 = vrot.slane %v732, 4
      %v734 = vadd.f32 %v732, %v733
      %v735 = vrot.slane %v734, 2
      %v736 = vadd.f32 %v734, %v735
      %v737 = vrot.slane %v736, 1
      %v738 = vadd.f32 %v736, %v737
      %s739 = vtos %v738
      %v740 = vrcp.pop 128.0
      %s741 = vtos %v740
      %s742 = smul.f32 %s683, %s741
      %v743 = vrcp.pop 2048.0
      %s744 = vtos %v743
      %s745 = smul.f32 %s739, %s744
      %s746 = sadd.f32 %s742, %s745
      %s747 = scalar_lea.smem [#allocation4], 0
      %748 = sst [smem:[%s747]] %s746
    $region17: #{tpu_custom_call.1} parent=1 // pred_fallthru
      _
    // Predicated region
    $region18: #{tpu_custom_call.1} parent=1 // pred_check
      _
    $region19: #{tpu_custom_call.1} parent=1 // pred_check_branch
      %750 = sbr.rel (0) target = $region21
    $region20: #{tpu_custom_call.1} parent=1 // pred_region
      %s752 = ssub.s32 16, 16
      %753 = vsyncadd [#allocation5], %s752
      %756 = dma.smem_to_hbm [#allocation4], 16, %s2, [#allocation5]
    $region21: #{tpu_custom_call.1} parent=1 // pred_fallthru
      _
    // Predicated region
    $region22: #{tpu_custom_call.1} parent=1 // pred_check
      _
    $region23: #{tpu_custom_call.1} parent=1 // pred_check_branch
      %758 = sbr.rel (0) target = $region25
    $region24: #{tpu_custom_call.1} parent=1 // pred_region
      %759 = dma.done [#allocation5], 16
    $region25: #{tpu_custom_call.1} parent=1 // pred_fallthru
      _
    %760 = sfence
    %761 = vsyncpa [#allocation5], 1

</llo_original>
